<compile_context>
chip_gen: v5e
topology: v5e:2x2
jax: 0.10.0
libtpu: 0.0.40
codegen_flags: <defaults>
</compile_context>

<pallas_src>
import functools

import jax
import jax.numpy as jnp
from jax.experimental import pallas as pl
from jax.experimental.pallas import tpu as pltpu


# --------------------------------------------------------------------------- #
# Fused encoder kernel: input 1x1 conv + per-block constant adds + output conv
# --------------------------------------------------------------------------- #
def fused_encoder_kernel(x_ref, w0_ref, b0_ref, consts_ref, wout_ref, bout_ref,
                         o_ref, *, n_blocks):
    # x_ref:     (TM, Cin)       input rows (B*L flattened, Cin on lanes)
    # w0_ref:    (Cin, C2)       Conv1d(128, 2d, 1) weight (transposed)
    # b0_ref:    (1, C2)
    # consts_ref:(n_blocks, C2)  precomputed per-block residual-branch constants
    # wout_ref:  (C2, C2)        encoder_out_conv weight (transposed)
    # bout_ref:  (1, C2)
    # o_ref:     (TM, C2)
    h = jnp.dot(x_ref[...], w0_ref[...], preferred_element_type=jnp.float32)
    h = h + b0_ref[...]
    cs = consts_ref[...]
    for i in range(n_blocks):          # static unroll: one broadcast add / block
        h = h + cs[i][None, :]
    o_ref[...] = (jnp.dot(h, wout_ref[...], preferred_element_type=jnp.float32)
                  + bout_ref[...])


# --------------------------------------------------------------------------- #
# pallas_call wrapper
# --------------------------------------------------------------------------- #
def _round_up(x, m):
    return ((x + m - 1) // m) * m


def fused_encoder_rows(x2d, w0, b0, consts, w_out, b_out):
    # x2d: (R, Cin) -> (R, C2)
    R, Cin = x2d.shape
    C2 = w0.shape[1]
    n_blocks = consts.shape[0]

    # Row tile: at least 2 grid steps where possible (uses both v7x TensorCores
    # via the "parallel" axis), capped at 128 rows, multiple of 8 sublanes.
    tm = min(128, _round_up(max(1, pl.cdiv(R, 2)), 8))
    r_pad = _round_up(R, tm)
    if r_pad != R:
        x2d = jnp.pad(x2d, ((0, r_pad - R), (0, 0)))

    kernel = functools.partial(fused_encoder_kernel, n_blocks=n_blocks)
    out = pl.pallas_call(
        kernel,
        out_shape=jax.ShapeDtypeStruct((r_pad, C2), jnp.float32),
        grid=(r_pad // tm,),
        in_specs=[
            pl.BlockSpec((tm, Cin), lambda i: (i, 0)),        # x rows tile
            pl.BlockSpec((Cin, C2), lambda i: (0, 0)),        # w0 (VMEM resident)
            pl.BlockSpec((1, C2), lambda i: (0, 0)),          # b0
            pl.BlockSpec((n_blocks, C2), lambda i: (0, 0)),   # block constants
            pl.BlockSpec((C2, C2), lambda i: (0, 0)),         # w_out
            pl.BlockSpec((1, C2), lambda i: (0, 0)),          # b_out
        ],
        out_specs=pl.BlockSpec((tm, C2), lambda i: (i, 0)),
        compiler_params=pltpu.CompilerParams(dimension_semantics=("parallel",)),
    )(x2d, w0, b0, consts, w_out, b_out)
    return out[:R]


def make_encoder():
    def forward(x_ncl, params):
        B, Cin, L = x_ncl.shape
        x = jnp.transpose(x_ncl, (0, 2, 1)).astype(jnp.float32)   # NCL -> (B, L, C)
        x2d = x.reshape(B * L, Cin)

        # Per-block constant residual contribution (hoisted; see header comment):
        # LayerNorm(1) output == beta3 elementwise, so the branch output is
        # relu(beta3) @ w3 + b3, independent of the data and the position.
        consts = []
        for blk in params["blocks"]:
            d = blk["w3"].shape[0]
            relu_b3 = jnp.maximum(blk["ln"][2, 1], 0.0)
            row = jnp.full((1, d), relu_b3, jnp.float32)
            consts.append(jnp.einsum("ld,dc->lc", row, blk["w3"])[0] + blk["b3"][0])
        consts = jnp.stack(consts)                                # (n_blocks, 2d)

        out2d = fused_encoder_rows(x2d, params["w0"], params["b0"], consts,
                                   params["w_out"], params["b_out"])
        C2 = out2d.shape[1]
        return jnp.transpose(out2d.reshape(B, L, C2), (0, 2, 1))  # back to NCL
    return jax.jit(forward)


# --------------------------------------------------------------------------- #
# Deterministic parameter init (synthetic; matmul-ready transposed layouts)
# --------------------------------------------------------------------------- #
def dilation_schedule(num_sets, set_size, max_dilation_rate):
    dils = []
    for _ in range(num_sets):
        rate = 1
        for _ in range(set_size):
            rate *= 2
            dils.append(rate if rate <= max_dilation_rate else max_dilation_rate)
    return tuple(dils)


def init_params(key, in_ch, d, num_sets, set_size, k):
    n_blocks = num_sets * set_size
    keys = iter(jax.random.split(key, 4 + 7 * n_blocks))

    def nrm(shape, scale=0.1):
        return (scale * jax.random.normal(next(keys), shape)).astype(jnp.float32)

    params = {
        "w0": nrm((in_ch, 2 * d)),        # Conv1d(128, 2d, 1) weight, transposed
        "b0": nrm((1, 2 * d)),
        "blocks": [],
        "w_out": nrm((2 * d, 2 * d)),     # Conv1d(2d, 2d, 1) weight, transposed
        "b_out": nrm((1, 2 * d)),
    }
    for _ in range(n_blocks):
        params["blocks"].append({
            "ln": nrm((3, 2), 0.5),       # [[gamma1,beta1],[gamma2,beta2],[gamma3,beta3]]
            "w1": nrm((2 * d, d)),        # Conv1d(2d, d, 1)   (unused by optimized path)
            "b1": nrm((1, d)),
            "w2": nrm((k, d, d)),         # Conv1d(d, d, k)    (unused by optimized path)
            "b2": nrm((1, d)),
            "w3": nrm((d, 2 * d)),        # Conv1d(d, 2d, 1)
            "b3": nrm((1, 2 * d)),
        })
    return params


# --------------------------------------------------------------------------- #
# Pure-JAX reference (full per-block chain, same module semantics) for validation
# --------------------------------------------------------------------------- #
def _ref_ln1(v, g, b, eps=1e-5):
    # nn.LayerNorm(1): group of size 1 -> mean == v, var == 0 (biased).
    return (v - v) * jax.lax.rsqrt(jnp.zeros_like(v) + eps) * g + b


def ref_forward(x_ncl, params, dilations, k, eps=1e-5):
    h = jnp.transpose(x_ncl, (0, 2, 1)).astype(jnp.float32)
    h = jnp.einsum("blc,cd->bld", h, params["w0"]) + params["b0"]
    for blk, dil in zip(params["blocks"], dilations):
        t = jnp.maximum(_ref_ln1(h, blk["ln"][0, 0], blk["ln"][0, 1], eps), 0.0)
        t = jnp.einsum("blc,cd->bld", t, blk["w1"]) + blk["b1"]
        t = jnp.maximum(_ref_ln1(t, blk["ln"][1, 0], blk["ln"][1, 1], eps), 0.0)
        pad = (k - 1) * dil // 2
        L = t.shape[1]
        tp = jnp.pad(t, ((0, 0), (pad, pad), (0, 0)))
        acc = jnp.zeros(t.shape, jnp.float32)
        for j in range(k):
            acc = acc + jnp.einsum("blc,cd->bld",
                                   tp[:, j * dil:j * dil + L], blk["w2"][j])
        t = acc + blk["b2"]
        t = jnp.maximum(_ref_ln1(t, blk["ln"][2, 0], blk["ln"][2, 1], eps), 0.0)
        t = jnp.einsum("blc,cd->bld", t, blk["w3"]) + blk["b3"]
        h = h + t
    h = jnp.einsum("blc,cd->bld", h, params["w_out"]) + params["b_out"]
    return jnp.transpose(h, (0, 2, 1))


# --------------------------------------------------------------------------- #
if __name__ == "__main__":
    # Small config consistent with BytenetEncoder(kernel_size=3, masked_kernel_size=3,
    # max_dilation_rate=4, num_sets=2, set_size=2, hidden_channels=32)
    B, IN_CH, L = 2, 128, 16
    D = 32
    NUM_SETS, SET_SIZE = 2, 2
    K = 3
    MAX_DIL = 4

    key = jax.random.PRNGKey(0)
    kp, kx = jax.random.split(key)
    params = init_params(kp, IN_CH, D, NUM_SETS, SET_SIZE, K)
    x_ncl = jax.random.normal(kx, (B, IN_CH, L), jnp.float32)   # PyTorch NCL input

    dils = dilation_schedule(NUM_SETS, SET_SIZE, MAX_DIL)       # (2, 4, 2, 4)
    encoder = make_encoder()

    out = jax.block_until_ready(encoder(x_ncl, params))
    assert out.shape == (B, 2 * D, L), out.shape

    ref = ref_forward(x_ncl, params, dils, K)
    max_err = float(jnp.max(jnp.abs(out - ref)))
    assert jnp.allclose(out, ref, atol=1e-4, rtol=1e-4), max_err

    print("KERNEL_OK")
</pallas_src>

<mosaic_0001>
module attributes {stable_mosaic.version = 11 : i64} {
  func.func @fused_encoder_kernel(%arg0: i32, %arg1: memref<16x128xf32, #tpu.memory_space<vmem>>, %arg2: memref<128x64xf32, #tpu.memory_space<vmem>>, %arg3: memref<1x64xf32, #tpu.memory_space<vmem>>, %arg4: memref<4x64xf32, #tpu.memory_space<vmem>>, %arg5: memref<64x64xf32, #tpu.memory_space<vmem>>, %arg6: memref<1x64xf32, #tpu.memory_space<vmem>>, %arg7: memref<16x64xf32, #tpu.memory_space<vmem>>) attributes {dimension_semantics = [#tpu.dimension_semantics<parallel>], iteration_bounds = array<i64: 2>, scalar_prefetch = 0 : i64, scratch_operands = 0 : i64, tpu.core_type = #tpu.core_type<tc>, window_params = [{transform_indices = @transform_0, window_bounds = array<i64: 16, 128>}, {pipeline_mode = #tpu.pipeline_mode<synchronous>, transform_indices = @transform_1, window_bounds = array<i64: 128, 64>}, {pipeline_mode = #tpu.pipeline_mode<synchronous>, transform_indices = @transform_2, window_bounds = array<i64: 1, 64>}, {pipeline_mode = #tpu.pipeline_mode<synchronous>, transform_indices = @transform_3, window_bounds = array<i64: 4, 64>}, {pipeline_mode = #tpu.pipeline_mode<synchronous>, transform_indices = @transform_4, window_bounds = array<i64: 64, 64>}, {pipeline_mode = #tpu.pipeline_mode<synchronous>, transform_indices = @transform_5, window_bounds = array<i64: 1, 64>}, {transform_indices = @transform_6, window_bounds = array<i64: 16, 64>}]} {
    %c0 = arith.constant 0 : index
    %c0_0 = arith.constant 0 : index
    %0 = vector.load %arg1[%c0, %c0_0] : memref<16x128xf32, #tpu.memory_space<vmem>>, vector<16x128xf32>
    %c0_1 = arith.constant 0 : index
    %c0_2 = arith.constant 0 : index
    %1 = vector.load %arg2[%c0_1, %c0_2] : memref<128x64xf32, #tpu.memory_space<vmem>>, vector<128x64xf32>
    %cst = arith.constant dense<0.000000e+00> : vector<16x64xf32>
    %2 = tpu.matmul %0, %1, %cst {dimension_numbers = #tpu.dot_dimension_numbers<[1], [0], [0], [1], [0, 0, 1, 1], [], []>} : vector<16x128xf32>, vector<128x64xf32>, vector<16x64xf32> -> vector<16x64xf32>
    %c0_3 = arith.constant 0 : index
    %c0_4 = arith.constant 0 : index
    %3 = vector.load %arg3[%c0_3, %c0_4] : memref<1x64xf32, #tpu.memory_space<vmem>>, vector<1x64xf32>
    %4 = vector.broadcast %3 : vector<1x64xf32> to vector<16x64xf32>
    %5 = arith.addf %2, %4 : vector<16x64xf32>
    %c0_5 = arith.constant 0 : index
    %c0_6 = arith.constant 0 : index
    %6 = vector.load %arg4[%c0_5, %c0_6] : memref<4x64xf32, #tpu.memory_space<vmem>>, vector<4x64xf32>
    %7 = vector.extract_strided_slice %6 {offsets = [0, 0], sizes = [1, 64], strides = [1, 1]} : vector<4x64xf32> to vector<1x64xf32>
    %8 = vector.shape_cast %7 : vector<1x64xf32> to vector<64xf32>
    %9 = vector.shape_cast %8 : vector<64xf32> to vector<1x64xf32>
    %10 = vector.broadcast %9 : vector<1x64xf32> to vector<16x64xf32>
    %11 = arith.addf %5, %10 : vector<16x64xf32>
    %12 = vector.extract_strided_slice %6 {offsets = [1, 0], sizes = [1, 64], strides = [1, 1]} : vector<4x64xf32> to vector<1x64xf32>
    %13 = vector.shape_cast %12 : vector<1x64xf32> to vector<64xf32>
    %14 = vector.shape_cast %13 : vector<64xf32> to vector<1x64xf32>
    %15 = vector.broadcast %14 : vector<1x64xf32> to vector<16x64xf32>
    %16 = arith.addf %11, %15 : vector<16x64xf32>
    %17 = vector.extract_strided_slice %6 {offsets = [2, 0], sizes = [1, 64], strides = [1, 1]} : vector<4x64xf32> to vector<1x64xf32>
    %18 = vector.shape_cast %17 : vector<1x64xf32> to vector<64xf32>
    %19 = vector.shape_cast %18 : vector<64xf32> to vector<1x64xf32>
    %20 = vector.broadcast %19 : vector<1x64xf32> to vector<16x64xf32>
    %21 = arith.addf %16, %20 : vector<16x64xf32>
    %22 = vector.extract_strided_slice %6 {offsets = [3, 0], sizes = [1, 64], strides = [1, 1]} : vector<4x64xf32> to vector<1x64xf32>
    %23 = vector.shape_cast %22 : vector<1x64xf32> to vector<64xf32>
    %24 = vector.shape_cast %23 : vector<64xf32> to vector<1x64xf32>
    %25 = vector.broadcast %24 : vector<1x64xf32> to vector<16x64xf32>
    %26 = arith.addf %21, %25 : vector<16x64xf32>
    %c0_7 = arith.constant 0 : index
    %c0_8 = arith.constant 0 : index
    %27 = vector.load %arg5[%c0_7, %c0_8] : memref<64x64xf32, #tpu.memory_space<vmem>>, vector<64x64xf32>
    %cst_9 = arith.constant dense<0.000000e+00> : vector<16x64xf32>
    %28 = tpu.matmul %26, %27, %cst_9 {dimension_numbers = #tpu.dot_dimension_numbers<[1], [0], [0], [1], [0, 0, 1, 1], [], []>} : vector<16x64xf32>, vector<64x64xf32>, vector<16x64xf32> -> vector<16x64xf32>
    %c0_10 = arith.constant 0 : index
    %c0_11 = arith.constant 0 : index
    %29 = vector.load %arg6[%c0_10, %c0_11] : memref<1x64xf32, #tpu.memory_space<vmem>>, vector<1x64xf32>
    %30 = vector.broadcast %29 : vector<1x64xf32> to vector<16x64xf32>
    %31 = arith.addf %28, %30 : vector<16x64xf32>
    %c0_12 = arith.constant 0 : index
    %c0_13 = arith.constant 0 : index
    %32 = vector.load %arg7[%c0_12, %c0_13] : memref<16x64xf32, #tpu.memory_space<vmem>>, vector<16x64xf32>
    tpu.vector_store %arg7[%c0_12, %c0_13], %31 {strides = array<i32>} : memref<16x64xf32, #tpu.memory_space<vmem>>, vector<16x64xf32>,
    return
  }
  func.func @transform_0(%arg0: i32) -> (i32, i32) {
    %c0_i32 = arith.constant 0 : i32
    %c0_i32_0 = arith.constant 0 : i32
    return %arg0, %c0_i32 : i32, i32
  }
  func.func @transform_1(%arg0: i32) -> (i32, i32) {
    %c0_i32 = arith.constant 0 : i32
    %c0_i32_0 = arith.constant 0 : i32
    %c0_i32_1 = arith.constant 0 : i32
    return %c0_i32, %c0_i32_0 : i32, i32
  }
  func.func @transform_2(%arg0: i32) -> (i32, i32) {
    %c0_i32 = arith.constant 0 : i32
    %c0_i32_0 = arith.constant 0 : i32
    %c0_i32_1 = arith.constant 0 : i32
    return %c0_i32, %c0_i32_0 : i32, i32
  }
  func.func @transform_3(%arg0: i32) -> (i32, i32) {
    %c0_i32 = arith.constant 0 : i32
    %c0_i32_0 = arith.constant 0 : i32
    %c0_i32_1 = arith.constant 0 : i32
    return %c0_i32, %c0_i32_0 : i32, i32
  }
  func.func @transform_4(%arg0: i32) -> (i32, i32) {
    %c0_i32 = arith.constant 0 : i32
    %c0_i32_0 = arith.constant 0 : i32
    %c0_i32_1 = arith.constant 0 : i32
    return %c0_i32, %c0_i32_0 : i32, i32
  }
  func.func @transform_5(%arg0: i32) -> (i32, i32) {
    %c0_i32 = arith.constant 0 : i32
    %c0_i32_0 = arith.constant 0 : i32
    %c0_i32_1 = arith.constant 0 : i32
    return %c0_i32, %c0_i32_0 : i32, i32
  }
  func.func @transform_6(%arg0: i32) -> (i32, i32) {
    %c0_i32 = arith.constant 0 : i32
    %c0_i32_0 = arith.constant 0 : i32
    return %arg0, %c0_i32 : i32, i32
  }
}

</mosaic_0001>

<llo_original>
// kernel: forward.1
$region0: #{forward.1}
  #allocation0 [shape = 'u32[]', space=smem, size = 0x4, offset = 0x4, fixed_abs, tag = 'smem constant byte address 0x4 - core index']
  #allocation1 [shape = 'u32[72,128]{1,0:T(1,128)}', space=vmem, size = 0x9000, scoped, tag = 'internal scratch']
  %s0 = inlined_call_operand.vmem [shape: f32[32,128], index: 0, kind: input, shape index: {}]
  %s1 = inlined_call_operand.vmem [shape: f32[128,64], index: 1, kind: input, shape index: {}]
  %s2 = inlined_call_operand.vmem [shape: f32[1,64], index: 2, kind: input, shape index: {}]
  %s3 = inlined_call_operand.vmem [shape: f32[4,64], index: 3, kind: input, shape index: {}]
  %s4 = inlined_call_operand.vmem [shape: f32[64,64], index: 4, kind: input, shape index: {}]
  %s5 = inlined_call_operand.vmem [shape: f32[1,64], index: 5, kind: input, shape index: {}]
  %s6 = inlined_call_operand.hbm [shape: f32[32,64], index: 6, kind: output, shape index: {}]
  %s7 = sld [smem:[#allocation0]]
  $region57: #{forward.1} parent=0
    _
  %s9 = ssub.s32 1, %s7
  %s10 = scalar_select 0, %s9, %s7
  $region1: #{forward.1} parent=0
    #allocation2 [shape = 'u8[16384]{0}', space=vmem, size = 0x4000, scoped, tag = 'output window, operand 0']
    #allocation3 [shape = 's32[2]{0}', space=sflag, size = 0x8, scoped, tag = 'scoped memory for forward.1']
    %11 = vsyncpa [#allocation3], 0
    %s12 = scalar_lea.sflag [#allocation3], 1
    %13 = vsyncpa %s12, 0
    loop: start=0, step=1, limit=4
    $region2: #{forward.1} parent=1 // loop_pre_header
      _
    $region3: #{forward.1} parent=1 // loop_header
      %s15 = sphi 0, %s19
      %p16 = scmp.ge.s32.totalorder %s15, 4
      %s25 = sphi 0, %s27
      %s28 = sphi 0, %s25
      %s29 = sphi 0, %s28
      %s45 = sphi 0, %s29
      %s49 = sphi 0, %s49
      %s51 = sphi 0, %s49
      %s52 = sphi 0, %s51
      %s66 = sphi 0, %s52
      %s70 = sphi 0, %s70
      %s72 = sphi 0, %s70
      %s73 = sphi 0, %s72
      %s87 = sphi 0, %s73
      %s91 = sphi 0, %s91
      %s93 = sphi 0, %s91
      %s94 = sphi 0, %s93
      %s108 = sphi 0, %s94
      %s112 = sphi 0, %s112
      %s114 = sphi 0, %s112
      %s115 = sphi 0, %s114
      %s129 = sphi 0, %s115
      %s133 = sphi 0, %s133
      %s135 = sphi 0, %s133
      %s136 = sphi 0, %s135
      %s150 = sphi 0, %s136
      %s156 = sphi 0, %s158
      %s159 = sphi 0, %s156
      %s160 = sphi 0, %s159
      %s176 = sphi 0, %s160
    $region4: #{forward.1} parent=1 // loop_header_branch
      %18 = sbr.rel (%p16) target = $region8
    $region5: #{forward.1} parent=1 // loop_body
      %s20 = ssub.s32 %s15, 1
      %s21 = ssub.s32 %s15, 2
      %s22 = sadd.s32 %s15, 1
      %s23 = ssub.s32 %s15, %s22
      %p24 = scmp.eq.s32.totalorder %s23, 0
      %s26 = sadd.s32 %s25, 1
      %s27 = scalar_select %p24, %s25, %s26
      %p30 = pneg %p24
      %p31 = scmp.eq.s32.totalorder %s15, 1
      %p32 = por %p30, %p31
      %p33 = scmp.ne.s32.totalorder %s25, %s28
      %p34 = scmp.eq.s32.totalorder %s15, 0
      %p35 = por %p33, %p34
      %p36 = scmp.ne.s32.totalorder %s25, %s28
      %p37 = scmp.eq.s32.totalorder %s20, 1
      %p38 = por %p36, %p37
      %p39 = scmp.ne.s32.totalorder %s28, %s29
      %p40 = scmp.eq.s32.totalorder %s20, 0
      %p41 = por %p39, %p40
      %p42 = scmp.ne.s32.totalorder %s28, %s29
      %p43 = scmp.eq.s32.totalorder %s21, 1
      %p44 = por %p42, %p43
      %p46 = scmp.ne.s32.totalorder %s29, %s45
      %p47 = scmp.eq.s32.totalorder %s21, 0
      %p48 = por %p46, %p47
      %s50 = sadd.s32 %s49, 1
      %p53 = scmp.eq.s32.totalorder %s15, 1
      %p54 = scmp.ne.s32.totalorder %s49, %s51
      %p55 = scmp.eq.s32.totalorder %s15, 0
      %p56 = por %p54, %p55
      %p57 = scmp.ne.s32.totalorder %s49, %s51
      %p58 = scmp.eq.s32.totalorder %s20, 1
      %p59 = por %p57, %p58
      %p60 = scmp.ne.s32.totalorder %s51, %s52
      %p61 = scmp.eq.s32.totalorder %s20, 0
      %p62 = por %p60, %p61
      %p63 = scmp.ne.s32.totalorder %s51, %s52
      %p64 = scmp.eq.s32.totalorder %s21, 1
      %p65 = por %p63, %p64
      %p67 = scmp.ne.s32.totalorder %s52, %s66
      %p68 = scmp.eq.s32.totalorder %s21, 0
      %p69 = por %p67, %p68
      %s71 = sadd.s32 %s70, 1
      %p74 = scmp.eq.s32.totalorder %s15, 1
      %p75 = scmp.ne.s32.totalorder %s70, %s72
      %p76 = scmp.eq.s32.totalorder %s15, 0
      %p77 = por %p75, %p76
      %p78 = scmp.ne.s32.totalorder %s70, %s72
      %p79 = scmp.eq.s32.totalorder %s20, 1
      %p80 = por %p78, %p79
      %p81 = scmp.ne.s32.totalorder %s72, %s73
      %p82 = scmp.eq.s32.totalorder %s20, 0
      %p83 = por %p81, %p82
      %p84 = scmp.ne.s32.totalorder %s72, %s73
      %p85 = scmp.eq.s32.totalorder %s21, 1
      %p86 = por %p84, %p85
      %p88 = scmp.ne.s32.totalorder %s73, %s87
      %p89 = scmp.eq.s32.totalorder %s21, 0
      %p90 = por %p88, %p89
      %s92 = sadd.s32 %s91, 1
      %p95 = scmp.eq.s32.totalorder %s15, 1
      %p96 = scmp.ne.s32.totalorder %s91, %s93
      %p97 = scmp.eq.s32.totalorder %s15, 0
      %p98 = por %p96, %p97
      %p99 = scmp.ne.s32.totalorder %s91, %s93
      %p100 = scmp.eq.s32.totalorder %s20, 1
      %p101 = por %p99, %p100
      %p102 = scmp.ne.s32.totalorder %s93, %s94
      %p103 = scmp.eq.s32.totalorder %s20, 0
      %p104 = por %p102, %p103
      %p105 = scmp.ne.s32.totalorder %s93, %s94
      %p106 = scmp.eq.s32.totalorder %s21, 1
      %p107 = por %p105, %p106
      %p109 = scmp.ne.s32.totalorder %s94, %s108
      %p110 = scmp.eq.s32.totalorder %s21, 0
      %p111 = por %p109, %p110
      %s113 = sadd.s32 %s112, 1
      %p116 = scmp.eq.s32.totalorder %s15, 1
      %p117 = scmp.ne.s32.totalorder %s112, %s114
      %p118 = scmp.eq.s32.totalorder %s15, 0
      %p119 = por %p117, %p118
      %p120 = scmp.ne.s32.totalorder %s112, %s114
      %p121 = scmp.eq.s32.totalorder %s20, 1
      %p122 = por %p120, %p121
      %p123 = scmp.ne.s32.totalorder %s114, %s115
      %p124 = scmp.eq.s32.totalorder %s20, 0
      %p125 = por %p123, %p124
      %p126 = scmp.ne.s32.totalorder %s114, %s115
      %p127 = scmp.eq.s32.totalorder %s21, 1
      %p128 = por %p126, %p127
      %p130 = scmp.ne.s32.totalorder %s115, %s129
      %p131 = scmp.eq.s32.totalorder %s21, 0
      %p132 = por %p130, %p131
      %s134 = sadd.s32 %s133, 1
      %p137 = scmp.eq.s32.totalorder %s15, 1
      %p138 = scmp.ne.s32.totalorder %s133, %s135
      %p139 = scmp.eq.s32.totalorder %s15, 0
      %p140 = por %p138, %p139
      %p141 = scmp.ne.s32.totalorder %s133, %s135
      %p142 = scmp.eq.s32.totalorder %s20, 1
      %p143 = por %p141, %p142
      %p144 = scmp.ne.s32.totalorder %s135, %s136
      %p145 = scmp.eq.s32.totalorder %s20, 0
      %p146 = por %p144, %p145
      %p147 = scmp.ne.s32.totalorder %s135, %s136
      %p148 = scmp.eq.s32.totalorder %s21, 1
      %p149 = por %p147, %p148
      %p151 = scmp.ne.s32.totalorder %s136, %s150
      %p152 = scmp.eq.s32.totalorder %s21, 0
      %p153 = por %p151, %p152
      %s154 = ssub.s32 %s15, %s22
      %p155 = scmp.eq.s32.totalorder %s154, 0
      %s157 = sadd.s32 %s156, 1
      %s158 = scalar_select %p155, %s156, %s157
      %p161 = pneg %p155
      %p162 = scmp.eq.s32.totalorder %s15, 1
      %p163 = por %p161, %p162
      %p164 = scmp.ne.s32.totalorder %s156, %s159
      %p165 = scmp.eq.s32.totalorder %s15, 0
      %p166 = por %p164, %p165
      %p167 = scmp.ne.s32.totalorder %s156, %s159
      %p168 = scmp.eq.s32.totalorder %s20, 1
      %p169 = por %p167, %p168
      %p170 = scmp.ne.s32.totalorder %s159, %s160
      %p171 = scmp.eq.s32.totalorder %s20, 0
      %p172 = por %p170, %p171
      %p173 = scmp.ne.s32.totalorder %s159, %s160
      %p174 = scmp.eq.s32.totalorder %s21, 1
      %p175 = por %p173, %p174
      %p177 = scmp.ne.s32.totalorder %s160, %s176
      %p178 = scmp.eq.s32.totalorder %s21, 0
      %p179 = por %p177, %p178
      %p180 = scmp.le.s32.totalorder 1, %s15
      %p181 = scmp.lt.s32.totalorder %s15, 3
      %p182 = pnand %p180, %p181
      %p183 = pneg %p182
      // Predicated region
      $region9: #{forward.1} parent=5 // pred_check
        _
      $region10: #{forward.1} parent=5 // pred_check_branch
        %185 = sbr.rel (%p182) target = $region12
      $region11: #{forward.1} parent=5 // pred_region
        %s186 = ssub.s32 %s15, 1
        // Predicated region
        $region13: #{forward.1} parent=11 // pred_check
          %p187 = pneg %p62
        $region14: #{forward.1} parent=11 // pred_check_branch
          %189 = sbr.rel (%p187) target = $region16
        $region15: #{forward.1} parent=11 // pred_region
          _
        $region16: #{forward.1} parent=11 // pred_fallthru
          _
        // Predicated region
        $region17: #{forward.1} parent=11 // pred_check
          %p190 = pneg %p83
        $region18: #{forward.1} parent=11 // pred_check_branch
          %192 = sbr.rel (%p190) target = $region20
        $region19: #{forward.1} parent=11 // pred_region
          _
        $region20: #{forward.1} parent=11 // pred_fallthru
          _
        // Predicated region
        $region21: #{forward.1} parent=11 // pred_check
          %p193 = pneg %p104
        $region22: #{forward.1} parent=11 // pred_check_branch
          %195 = sbr.rel (%p193) target = $region24
        $region23: #{forward.1} parent=11 // pred_region
          _
        $region24: #{forward.1} parent=11 // pred_fallthru
          _
        // Predicated region
        $region25: #{forward.1} parent=11 // pred_check
          %p196 = pneg %p125
        $region26: #{forward.1} parent=11 // pred_check_branch
          %198 = sbr.rel (%p196) target = $region28
        $region27: #{forward.1} parent=11 // pred_region
          _
        $region28: #{forward.1} parent=11 // pred_fallthru
          _
        // Predicated region
        $region29: #{forward.1} parent=11 // pred_check
          %p199 = pneg %p146
        $region30: #{forward.1} parent=11 // pred_check_branch
          %201 = sbr.rel (%p199) target = $region32
        $region31: #{forward.1} parent=11 // pred_region
          _
        $region32: #{forward.1} parent=11 // pred_fallthru
          _
      $region12: #{forward.1} parent=5 // pred_fallthru
        _
      %p202 = scmp.lt.s32.totalorder %s15, 2
      // Predicated region
      $region33: #{forward.1} parent=5 // pred_check
        %p203 = pneg %p202
      $region34: #{forward.1} parent=5 // pred_check_branch
        %205 = sbr.rel (%p203) target = $region36
      $region35: #{forward.1} parent=5 // pred_region
        // Predicated region
        $region37: #{forward.1} parent=35 // pred_check
          %p206 = pneg %p35
        $region38: #{forward.1} parent=35 // pred_check_branch
          %208 = sbr.rel (%p206) target = $region40
        $region39: #{forward.1} parent=35 // pred_region
          %s209 = smul.u32 2, %s15
          %p210 = scmp.lt.s32.totalorder %s209, 3
          %s211 = scalar_select %p210, %s209, 3
          %s212 = smul.addr %s211, 8
          %s213 = scalar_lea.vmem %s0, %s212
          %s214 = smul.u32 2, %s15
        $region40: #{forward.1} parent=35 // pred_fallthru
          _
      $region36: #{forward.1} parent=5 // pred_fallthru
        _
      %p215 = scmp.le.s32.totalorder 1, %s15
      %p216 = scmp.lt.s32.totalorder %s15, 3
      %p217 = pnand %p215, %p216
      %p218 = pneg %p217
      // Predicated region
      $region41: #{forward.1} parent=5 // pred_check
        _
      $region42: #{forward.1} parent=5 // pred_check_branch
        %220 = sbr.rel (%p217) target = $region44
      $region43: #{forward.1} parent=5 // pred_region
        %s221 = ssub.s32 %s15, 1
        %s222 = smul.u32 2, %s20
        %p223 = scmp.lt.s32.totalorder %s222, 3
        %s224 = scalar_select %p223, %s222, 3
        %s225 = smul.addr %s224, 8
        %s226 = scalar_lea.vmem %s0, %s225
        %p227 = pneg %p41
        %p228 = pneg %p38
        %p229 = pneg %p62
        %p230 = pneg %p59
        %p231 = pneg %p83
        %p232 = pneg %p80
        %p233 = pneg %p104
        %p234 = pneg %p101
        %p235 = pneg %p125
        %p236 = pneg %p122
        %p237 = pneg %p146
        %p238 = pneg %p143
        %p239 = pneg %p172
        %p240 = pneg %p169
        %s241 = sand.u32 %s159, 1
        %s242 = scalar_lea.sflag [#allocation3], %s241
        %s243 = sand.u32 %s159, 1
        %s244 = smul.addr %s243, 16
        %s245 = scalar_lea.vmem [#allocation2], %s244
        %s246 = smul.u32 2, %s20
        %p247 = scmp.lt.s32.totalorder %s246, 3
        %s248 = scalar_select %p247, %s246, 3
        %s249 = smul.addr %s248, 8
        %s250 = scalar_lea.vmem %s0, %s249
        %s251 = smul.u32 2, %s20
        %s252 = smul.u32 2, %s20
        %v253 = vld [vmem:[%s250] sm:$0xff]
        %v254 = vld [vmem:[%s250 + $0x8] sm:$0xff]
        %v255 = vld [vmem:[%s1] sm:$0xff]
        %v256 = vld [vmem:[%s1 + $0x8] sm:$0xff]
        %v257 = vld [vmem:[%s1 + $0x10] sm:$0xff]
        %v258 = vld [vmem:[%s1 + $0x18] sm:$0xff]
        %v259 = vld [vmem:[%s1 + $0x20] sm:$0xff]
        %v260 = vld [vmem:[%s1 + $0x28] sm:$0xff]
        %v261 = vld [vmem:[%s1 + $0x30] sm:$0xff]
        %v262 = vld [vmem:[%s1 + $0x38] sm:$0xff]
        %v263 = vld [vmem:[%s1 + $0x40] sm:$0xff]
        %v264 = vld [vmem:[%s1 + $0x48] sm:$0xff]
        %v265 = vld [vmem:[%s1 + $0x50] sm:$0xff]
        %v266 = vld [vmem:[%s1 + $0x58] sm:$0xff]
        %v267 = vld [vmem:[%s1 + $0x60] sm:$0xff]
        %v268 = vld [vmem:[%s1 + $0x68] sm:$0xff]
        %v269 = vld [vmem:[%s1 + $0x70] sm:$0xff]
        %v270 = vld [vmem:[%s1 + $0x78] sm:$0xff]
        %v271 = vld [vmem:[%s2] sm:$0x1]
        %v273 = vperm.slane %v271, 0
        %275 = vmatpush.msra.mxu0 %v270
        %276 = vmatpush.msra.mxu0 %v269
        %277 = vmatpush.msra.mxu0 %v268
        %278 = vmatpush.msra.mxu0 %v267
        %279 = vmatpush.msra.mxu0 %v266
        %280 = vmatpush.msra.mxu0 %v265
        %281 = vmatpush.msra.mxu0 %v264
        %282 = vmatpush.msra.mxu0 %v263
        %283 = vmatpush.msra.mxu0 %v262
        %284 = vmatpush.msra.mxu0 %v261
        %285 = vmatpush.msra.mxu0 %v260
        %286 = vmatpush.msra.mxu0 %v259
        %287 = vmatpush.msra.mxu0 %v258
        %288 = vmatpush.msra.mxu0 %v257
        %289 = vmatpush.msra.mxu0 %v256
        %290 = vmatpush.msra.mxu0 %v255
        %291 = vmatmul.f32.gmra.mxu0 %v253
        %v292 = vpop.f32.mrf.mxu0
        %v293 = vadd.f32 %v273, %v292
        %294 = vmatmul.f32.gmra.mxu0 %v254
        %v295 = vpop.f32.mrf.mxu0
        %v296 = vadd.f32 %v273, %v295
        %297 = vdwg.mxu0
        %v298 = vld [vmem:[%s3] sm:$0xf]
        %v299 = vperm.slane %v298, 0
        %v300 = vadd.f32 %v293, %v299
        %v301 = vadd.f32 %v296, %v299
        %v302 = vperm.slane %v298, 1
        %v303 = vadd.f32 %v300, %v302
        %v304 = vadd.f32 %v301, %v302
        %v305 = vperm.slane %v298, 2
        %v306 = vadd.f32 %v303, %v305
        %v307 = vadd.f32 %v304, %v305
        %v308 = vperm.slane %v298, 3
        %v309 = vadd.f32 %v306, %v308
        %v310 = vadd.f32 %v307, %v308
        %v311 = vld [vmem:[%s4] sm:$0xff]
        %v312 = vld [vmem:[%s4 + $0x8] sm:$0xff]
        %v313 = vld [vmem:[%s4 + $0x10] sm:$0xff]
        %v314 = vld [vmem:[%s4 + $0x18] sm:$0xff]
        %v315 = vld [vmem:[%s4 + $0x20] sm:$0xff]
        %v316 = vld [vmem:[%s4 + $0x28] sm:$0xff]
        %v317 = vld [vmem:[%s4 + $0x30] sm:$0xff]
        %v318 = vld [vmem:[%s4 + $0x38] sm:$0xff]
        %v319 = vld [vmem:[%s5] sm:$0x1]
        %v321 = vperm.slane %v319, 0
        %vm323 = vcmask 523264
        %v325 = vsel %vm323, %v309, 0
        %v328 = vsel %vm323, %v310, 0
        %330 = vmatpush.msra.mxu0 0.0
        %331 = vmatpush.msra.mxu0 0.0
        %332 = vmatpush.msra.mxu0 0.0
        %333 = vmatpush.msra.mxu0 0.0
        %334 = vmatpush.msra.mxu0 0.0
        %335 = vmatpush.msra.mxu0 0.0
        %336 = vmatpush.msra.mxu0 0.0
        %337 = vmatpush.msra.mxu0 0.0
        %338 = vmatpush.msra.mxu0 %v318
        %339 = vmatpush.msra.mxu0 %v317
        %340 = vmatpush.msra.mxu0 %v316
        %341 = vmatpush.msra.mxu0 %v315
        %342 = vmatpush.msra.mxu0 %v314
        %343 = vmatpush.msra.mxu0 %v313
        %344 = vmatpush.msra.mxu0 %v312
        %345 = vmatpush.msra.mxu0 %v311
        %346 = vmatmul.f32.gmra.mxu0 %v325
        %v347 = vpop.f32.mrf.mxu0
        %v348 = vadd.f32 %v321, %v347
        %349 = vmatmul.f32.gmra.mxu0 %v328
        %v350 = vpop.f32.mrf.mxu0
        %v351 = vadd.f32 %v321, %v350
        %352 = vdwg.mxu0
        %353 = vst.msk [vmem:[%s245] sm:$0xff] %vm323, %v348
        %354 = vst.msk [vmem:[%s245 + $0x8] sm:$0xff] %vm323, %v351
        %s355 = sand.u32 %s159, 1
        %s356 = scalar_lea.sflag [#allocation3], %s355
        %s357 = sand.u32 %s159, 1
        %s358 = smul.addr %s357, 16
        %s359 = scalar_lea.vmem [#allocation2], %s358
        // Predicated region
        $region45: #{forward.1} parent=43 // pred_check
          %p360 = pneg %p169
        $region46: #{forward.1} parent=43 // pred_check_branch
          %362 = sbr.rel (%p360) target = $region48
        $region47: #{forward.1} parent=43 // pred_region
          %s363 = smul.u32 2, %s20
          %365 = vsyncadd %s356, 0
          %s366 = smul.addr %s363, 8
          %s367 = scalar_lea.hbm %s6, %s366
          %s368 = sshll.u32 %s359, 4
          %s369 = int_to_ptr.vmem [resolvable:$true] %s368
          %s370 = sshll.u32 %s367, 4
          %s371 = int_to_ptr.hbm [resolvable:$true] %s370
          %376 = dma.vmem_to_hbm [thread:$0]  %s369, 256, %s371, %s356, 128, 128, 8
        $region48: #{forward.1} parent=43 // pred_fallthru
          _
      $region44: #{forward.1} parent=5 // pred_fallthru
        _
      %p377 = scmp.le.s32.totalorder 2, %s15
      // Predicated region
      $region49: #{forward.1} parent=5 // pred_check
        %p378 = pneg %p377
      $region50: #{forward.1} parent=5 // pred_check_branch
        %380 = sbr.rel (%p378) target = $region52
      $region51: #{forward.1} parent=5 // pred_region
        %s381 = ssub.s32 %s15, 2
        // Predicated region
        $region53: #{forward.1} parent=51 // pred_check
          %p382 = pneg %p175
        $region54: #{forward.1} parent=51 // pred_check_branch
          %384 = sbr.rel (%p382) target = $region56
        $region55: #{forward.1} parent=51 // pred_region
          %s385 = sand.u32 %s160, 1
          %s386 = scalar_lea.sflag [#allocation3], %s385
          %s387 = sand.u32 %s160, 1
          %s388 = smul.addr %s387, 16
          %s389 = scalar_lea.vmem [#allocation2], %s388
          %391 = dma.done %s386, 256
        $region56: #{forward.1} parent=51 // pred_fallthru
          _
      $region52: #{forward.1} parent=5 // pred_fallthru
        _
    $region6: #{forward.1} parent=1 // loop_footer
      %s19 = sadd.s32 1, %s15
    $region7: #{forward.1} parent=1 // loop_footer_branch
      %14 = sbr.rel target = $region3
    $region8: #{forward.1} parent=1 // loop_exit
      _
    %392 = vsyncpa [#allocation3], 1
    %s393 = scalar_lea.sflag [#allocation3], 1
    %394 = vsyncpa %s393, 1

</llo_original>
